<compile_context>
chip_gen: v7x
topology: tpu7x:2x2x1
jax: 0.10.0
libtpu: 0.0.40
codegen_flags: <defaults>
</compile_context>

<pallas_src>
import functools

import jax
import jax.numpy as jnp
import numpy as np
from jax.experimental import pallas as pl
from jax.experimental.pallas import tpu as pltpu


# ---------------------------------------------------------------------------
# Helpers
# ---------------------------------------------------------------------------
def make_divisible(v, divisor=8, min_value=None, round_limit=0.9):
    # matches timm / unipercept make_divisible
    min_value = min_value or divisor
    new_v = max(min_value, int(v + divisor / 2) // divisor * divisor)
    if new_v < round_limit * v:
        new_v += divisor
    return new_v


_DEFAULT_PHYS_VMEM = 64 * 1024 * 1024  # conservative fallback (v7x per-core)


def _vmem_caps():
    """(physical_vmem_bytes, scoped_limit_bytes) for the current chip."""
    phys = _DEFAULT_PHYS_VMEM
    try:
        info = pltpu.get_tpu_info()
        cap = int(getattr(info, "vmem_capacity_bytes", 0) or 0)
        if cap > 0:
            phys = cap
    except Exception:
        pass
    # 32 MiB scoped on v7x (64 MiB physical), 64 MiB on v5e/v6e (128 MiB).
    scoped = min(phys // 2, 64 * 1024 * 1024)
    return phys, scoped


def _largest_divisor_multiple(n, unit, cap):
    """Largest d with d % unit == 0, n % d == 0 and d <= cap (None if none)."""
    cap = max(cap, 0)
    if n % unit != 0:
        return n if n <= cap else None
    d = (min(cap, n) // unit) * unit
    while d >= unit:
        if n % d == 0:
            return d
        d -= unit
    return None


def _choose_tiles(rows, S, itemsize, target_bytes):
    """Pick (row_tile, spatial_tile) for the streaming passes.

    Spatial tile: multiple of 128 dividing S (lane-dense blocks) when
    possible.  Row tile: multiple of 8 dividing rows (full sublane
    occupancy), sized so the block stays under the per-chip byte target.
    """
    ts = _largest_divisor_multiple(S, 128, max(128, target_bytes // (8 * itemsize)))
    if ts is None:
        # S not a multiple of 128 and too large for an 8-row block: take the
        # whole spatial extent and shrink the row tile instead.
        # TODO(synk): masked partial spatial tiles for huge non-128-multiple S.
        ts = S
    row_cap = max(8, target_bytes // (ts * itemsize))
    tr = _largest_divisor_multiple(rows, 8, row_cap)
    if tr is None:
        tr = rows
    return tr, ts


# ---------------------------------------------------------------------------
# Kernels
# ---------------------------------------------------------------------------
def _fused_kernel(x_ref, w1t_ref, b1_ref, gamma_ref, beta_ref, w2_ref, b2_ref,
                  o_ref, *, inv_s, eps):
    """Whole SE block for one sample: pool -> MLP -> excite (x read once)."""
    x = x_ref[...]                                                     # (C, S)
    # squeeze: per-channel mean, f32 accumulation (VPU adds + XLU lane fold).
    mean = jnp.sum(x, axis=-1, keepdims=True, dtype=jnp.float32) * inv_s   # (C,1)
    # map1 (1x1 conv == dense), kept lane-major: h[r] = sum_c w1[r,c] mean[c].
    h = jnp.sum(w1t_ref[...] * mean, axis=0, keepdims=True) + b1_ref[...]  # (1,R)
    # GroupNorm(1, R): biased variance over R, then per-channel affine.
    mu = jnp.mean(h, axis=-1, keepdims=True)
    var = jnp.mean((h - mu) * (h - mu), axis=-1, keepdims=True)
    h = (h - mu) * jax.lax.rsqrt(var + eps) * gamma_ref[...] + beta_ref[...]
    h = jnp.maximum(h, 0.0)                                                # ReLU
    # map2: g[c] = sum_r w2[c,r] h[r].
    g = jnp.sum(w2_ref[...] * h, axis=-1, keepdims=True) + b2_ref[...]     # (C,1)
    gate = 1.0 / (1.0 + jnp.exp(-g))                                       # sigmoid (f32, EUP)
    # excite: keep the gate in f32, cast the product once.
    o_ref[...] = (x * gate).astype(o_ref.dtype)


def _pool_partial_kernel(x_ref, part_ref):
    """Per-(row-block, spatial-block) channel sums, accumulated in f32."""
    part_ref[...] = jnp.sum(x_ref[...], axis=-1, keepdims=True,
                            dtype=jnp.float32)


def _apply_kernel(gate_ref, x_ref, o_ref):
    """Excite: multiply each row by its f32 gate, cast the product once."""
    o_ref[...] = (x_ref[...] * gate_ref[...]).astype(o_ref.dtype)


# ---------------------------------------------------------------------------
# Host-side pieces
# ---------------------------------------------------------------------------
def _gate_mlp(mean, params, eps):
    """Tiny MLP (map1 -> GroupNorm(1,R) -> ReLU -> map2 -> sigmoid) on (N, C).

    Element-wise f32 formulation (negligible FLOPs) so the streaming path and
    the reference share exact math.
    """
    w1, b1, gamma, beta, w2, b2 = params
    R, C = w1.shape[0], w1.shape[1]
    w1m = w1.reshape(R, C).astype(jnp.float32)
    w2m = w2.reshape(C, R).astype(jnp.float32)
    h = jnp.sum(mean[:, None, :] * w1m[None, :, :], axis=-1) + b1      # (N, R)
    mu = jnp.mean(h, axis=1, keepdims=True)
    var = jnp.mean((h - mu) ** 2, axis=1, keepdims=True)
    h = (h - mu) * jax.lax.rsqrt(var + eps) * gamma + beta
    h = jnp.maximum(h, 0.0)
    g = jnp.sum(h[:, None, :] * w2m[None, :, :], axis=-1) + b2         # (N, C)
    return 1.0 / (1.0 + jnp.exp(-g))                                   # sigmoid


def _fused_forward(x, params, eps, vmem_limit, donate_x):
    """Single-pass SE: one read + one write of x (per-sample slab fits VMEM)."""
    w1, b1, gamma, beta, w2, b2 = params
    N, C, S = x.shape
    R = w1.shape[0]
    f32 = jnp.float32
    w1t = w1.reshape(R, C).astype(f32).T          # (C, R)
    w2m = w2.reshape(C, R).astype(f32)            # (C, R)
    b1r = b1.reshape(1, R).astype(f32)
    gr = gamma.reshape(1, R).astype(f32)
    br = beta.reshape(1, R).astype(f32)
    b2c = b2.reshape(C, 1).astype(f32)

    kernel = functools.partial(_fused_kernel, inv_s=1.0 / S, eps=float(eps))
    full = lambda n: (0, 0)
    kwargs = {}
    if donate_x:
        kwargs["input_output_aliases"] = {0: 0}
    return pl.pallas_call(
        kernel,
        out_shape=jax.ShapeDtypeStruct((N, C, S), x.dtype),
        grid_spec=pltpu.PrefetchScalarGridSpec(
            num_scalar_prefetch=0,
            grid=(N,),
            in_specs=[
                pl.BlockSpec((pl.Squeezed(), C, S), lambda n: (n, 0, 0)),
                pl.BlockSpec((C, R), full),
                pl.BlockSpec((1, R), full),
                pl.BlockSpec((1, R), full),
                pl.BlockSpec((1, R), full),
                pl.BlockSpec((C, R), full),
                pl.BlockSpec((C, 1), full),
            ],
            out_specs=pl.BlockSpec((pl.Squeezed(), C, S), lambda n: (n, 0, 0)),
        ),
        compiler_params=pltpu.CompilerParams(
            dimension_semantics=("parallel",),
            vmem_limit_bytes=int(vmem_limit)),
        **kwargs,
    )(x, w1t, b1r, gr, br, w2m, b2c)


def _streaming_forward(x, params, eps, phys, scoped, donate_x):
    """Fallback: streaming pool (per-chunk partials) -> JAX MLP -> streaming excite."""
    N, C, S = x.shape
    rows = N * C
    itemsize = x.dtype.itemsize
    x2 = x.reshape(rows, S)                      # free reshape; rows on sublanes

    target = max(1 << 20, min(scoped // 8, 6 * 1024 * 1024))
    tr, ts = _choose_tiles(rows, S, itemsize, target)
    block_bytes = tr * ts * itemsize
    vmem_limit = int(min(max(scoped, 4 * block_bytes + (4 << 20)),
                         max(scoped, int(phys * 0.9))))
    nR = rows // tr
    nS = S // ts

    # phase 1: per-chunk partial sums; both grid axes "parallel" so v7x's two
    # TensorCores split the HBM stream even at small batch.
    partials = pl.pallas_call(
        _pool_partial_kernel,
        out_shape=jax.ShapeDtypeStruct((nS, rows, 1), jnp.float32),
        grid_spec=pltpu.PrefetchScalarGridSpec(
            num_scalar_prefetch=0,
            grid=(nR, nS),
            in_specs=[pl.BlockSpec((tr, ts), lambda r, s: (r, s))],
            out_specs=pl.BlockSpec((pl.Squeezed(), tr, 1), lambda r, s: (s, r, 0)),
        ),
        compiler_params=pltpu.CompilerParams(
            dimension_semantics=("parallel", "parallel"),
            vmem_limit_bytes=vmem_limit),
    )(x2)

    mean = partials.sum(axis=0).reshape(N, C) * (1.0 / S)     # (N, C) f32
    gate = _gate_mlp(mean, params, eps)                       # (N, C) f32
    gate_rows = gate.reshape(rows, 1)

    # phase 2: streaming excite (one read of x, one lane-dense write).
    kwargs = {}
    if donate_x:
        kwargs["input_output_aliases"] = {1: 0}
    out = pl.pallas_call(
        _apply_kernel,
        out_shape=jax.ShapeDtypeStruct((rows, S), x.dtype),
        grid_spec=pltpu.PrefetchScalarGridSpec(
            num_scalar_prefetch=0,
            grid=(nR, nS),
            in_specs=[
                pl.BlockSpec((tr, 1), lambda r, s: (r, 0)),
                pl.BlockSpec((tr, ts), lambda r, s: (r, s)),
            ],
            out_specs=pl.BlockSpec((tr, ts), lambda r, s: (r, s)),
        ),
        compiler_params=pltpu.CompilerParams(
            dimension_semantics=("parallel", "parallel"),
            vmem_limit_bytes=vmem_limit),
        **kwargs,
    )(gate_rows, x2)
    return out.reshape(N, C, S)


def squeeze_excite_2d(x_nchw, params, *, eps=1e-5, fused_slab_cap_bytes=None,
                      donate_x=False):
    """Pallas implementation of SqueezeExcite2d.forward (input/output NCHW)."""
    N, C, H, W = x_nchw.shape
    S = H * W
    itemsize = x_nchw.dtype.itemsize
    phys, scoped = _vmem_caps()

    # Free reshape: NCHW -> (N, C, S).  C on sublanes, S on lanes.
    x = x_nchw.reshape(N, C, S)

    slab = C * S * itemsize
    if fused_slab_cap_bytes is None:
        # 2x in + 2x out double-buffered slabs (+ weights/temporaries) must
        # fit the scoped limit: ~6 MiB cap on v7x, ~12 MiB on v5e/v6e.
        fused_slab_cap_bytes = min(scoped // 5, 12 * 1024 * 1024)

    if slab <= fused_slab_cap_bytes:
        out = _fused_forward(x, params, eps, scoped, donate_x)
    else:
        out = _streaming_forward(x, params, eps, phys, scoped, donate_x)
    return out.reshape(N, C, H, W)


# ---------------------------------------------------------------------------
# Reference + test
# ---------------------------------------------------------------------------
def reference(x, params, *, eps=1e-5):
    """Pure-JAX reference mirroring the PyTorch forward (NCHW)."""
    mean = jnp.mean(x.astype(jnp.float32), axis=(2, 3))       # (N, C)
    gate = _gate_mlp(mean, params, eps)                       # (N, C)
    return (x.astype(jnp.float32) * gate[:, :, None, None]).astype(x.dtype)


def init_params(key, channels, ratio=1.0 / 16, divisor=8):
    reduction = make_divisible(channels * ratio, divisor, round_limit=0.0)
    k1, k2, k3, k4, k5, k6 = jax.random.split(key, 6)
    w1 = jax.random.normal(k1, (reduction, channels, 1, 1), jnp.float32) * 0.2
    b1 = jax.random.normal(k2, (reduction,), jnp.float32) * 0.1
    gamma = 1.0 + 0.1 * jax.random.normal(k3, (reduction,), jnp.float32)
    beta = 0.1 * jax.random.normal(k4, (reduction,), jnp.float32)
    w2 = jax.random.normal(k5, (channels, reduction, 1, 1), jnp.float32) * 0.2
    b2 = jax.random.normal(k6, (channels,), jnp.float32) * 0.1
    return (w1, b1, gamma, beta, w2, b2)


if __name__ == "__main__":
    key = jax.random.PRNGKey(0)
    kx, kp, kx2, kp2 = jax.random.split(key, 4)

    # ---- small shape: fused single-pass path ------------------------------
    N, C, H, W = 2, 4, 16, 16
    x = jax.random.normal(kx, (N, C, H, W), jnp.float32)
    params = init_params(kp, C)
    out = jax.block_until_ready(squeeze_excite_2d(x, params))
    np.testing.assert_allclose(np.asarray(out), np.asarray(reference(x, params)),
                               rtol=1e-5, atol=1e-5)

    # ---- force the streaming fallback (pool partials -> MLP -> excite) ----
    N2, C2, H2, W2 = 2, 16, 32, 32
    x_big = jax.random.normal(kx2, (N2, C2, H2, W2), jnp.float32)
    params2 = init_params(kp2, C2)
    out2 = jax.block_until_ready(
        squeeze_excite_2d(x_big, params2, fused_slab_cap_bytes=0))
    np.testing.assert_allclose(np.asarray(out2),
                               np.asarray(reference(x_big, params2)),
                               rtol=1e-5, atol=1e-5)

    print("KERNEL_OK")
</pallas_src>

<mosaic_0001>
module attributes {stable_mosaic.version = 11 : i64} {
  func.func @_fused_kernel(%arg0: i32, %arg1: memref<1x4x256xf32, #tpu.memory_space<vmem>>, %arg2: memref<4x8xf32, #tpu.memory_space<vmem>>, %arg3: memref<1x8xf32, #tpu.memory_space<vmem>>, %arg4: memref<1x8xf32, #tpu.memory_space<vmem>>, %arg5: memref<1x8xf32, #tpu.memory_space<vmem>>, %arg6: memref<4x8xf32, #tpu.memory_space<vmem>>, %arg7: memref<4x1xf32, #tpu.memory_space<vmem>>, %arg8: memref<1x4x256xf32, #tpu.memory_space<vmem>>) attributes {dimension_semantics = [#tpu.dimension_semantics<parallel>], iteration_bounds = array<i64: 2>, scalar_prefetch = 0 : i64, scratch_operands = 0 : i64, tpu.core_type = #tpu.core_type<tc>, window_params = [{transform_indices = @transform_0, window_bounds = array<i64: 1, 4, 256>}, {pipeline_mode = #tpu.pipeline_mode<synchronous>, transform_indices = @transform_1, window_bounds = array<i64: 4, 8>}, {pipeline_mode = #tpu.pipeline_mode<synchronous>, transform_indices = @transform_2, window_bounds = array<i64: 1, 8>}, {pipeline_mode = #tpu.pipeline_mode<synchronous>, transform_indices = @transform_3, window_bounds = array<i64: 1, 8>}, {pipeline_mode = #tpu.pipeline_mode<synchronous>, transform_indices = @transform_4, window_bounds = array<i64: 1, 8>}, {pipeline_mode = #tpu.pipeline_mode<synchronous>, transform_indices = @transform_5, window_bounds = array<i64: 4, 8>}, {pipeline_mode = #tpu.pipeline_mode<synchronous>, transform_indices = @transform_6, window_bounds = array<i64: 4, 1>}, {transform_indices = @transform_7, window_bounds = array<i64: 1, 4, 256>}]} {
    %c0 = arith.constant 0 : index
    %c0_0 = arith.constant 0 : index
    %c0_1 = arith.constant 0 : index
    %0 = vector.load %arg1[%c0, %c0_0, %c0_1] : memref<1x4x256xf32, #tpu.memory_space<vmem>>, vector<1x4x256xf32>
    %1 = vector.shape_cast %0 : vector<1x4x256xf32> to vector<4x256xf32>
    %cst = arith.constant dense<0.000000e+00> : vector<4xf32>
    %2 = vector.multi_reduction <add>, %1, %cst [1] : vector<4x256xf32> to vector<4xf32>
    %3 = vector.shape_cast %2 : vector<4xf32> to vector<4x1xf32>
    %cst_2 = arith.constant 3.906250e-03 : f32
    %4 = vector.broadcast %cst_2 : f32 to vector<4x1xf32>
    %5 = arith.mulf %3, %4 : vector<4x1xf32>
    %c0_3 = arith.constant 0 : index
    %c0_4 = arith.constant 0 : index
    %6 = vector.load %arg2[%c0_3, %c0_4] : memref<4x8xf32, #tpu.memory_space<vmem>>, vector<4x8xf32>
    %7 = vector.broadcast %5 : vector<4x1xf32> to vector<4x8xf32>
    %8 = arith.mulf %6, %7 : vector<4x8xf32>
    %cst_5 = arith.constant dense<0.000000e+00> : vector<8xf32>
    %9 = vector.multi_reduction <add>, %8, %cst_5 [0] : vector<4x8xf32> to vector<8xf32>
    %10 = vector.shape_cast %9 : vector<8xf32> to vector<1x8xf32>
    %c0_6 = arith.constant 0 : index
    %c0_7 = arith.constant 0 : index
    %11 = vector.load %arg3[%c0_6, %c0_7] : memref<1x8xf32, #tpu.memory_space<vmem>>, vector<1x8xf32>
    %12 = arith.addf %10, %11 : vector<1x8xf32>
    %cst_8 = arith.constant dense<0.000000e+00> : vector<1xf32>
    %13 = vector.multi_reduction <add>, %12, %cst_8 [1] : vector<1x8xf32> to vector<1xf32>
    %14 = vector.shape_cast %13 : vector<1xf32> to vector<1x1xf32>
    %cst_9 = arith.constant 8.000000e+00 : f32
    %15 = vector.broadcast %cst_9 : f32 to vector<1x1xf32>
    %16 = arith.divf %14, %15 : vector<1x1xf32>
    %17 = vector.broadcast %16 : vector<1x1xf32> to vector<1x8xf32>
    %18 = arith.subf %12, %17 : vector<1x8xf32>
    %19 = vector.broadcast %16 : vector<1x1xf32> to vector<1x8xf32>
    %20 = arith.subf %12, %19 : vector<1x8xf32>
    %21 = arith.mulf %18, %20 : vector<1x8xf32>
    %cst_10 = arith.constant dense<0.000000e+00> : vector<1xf32>
    %22 = vector.multi_reduction <add>, %21, %cst_10 [1] : vector<1x8xf32> to vector<1xf32>
    %23 = vector.shape_cast %22 : vector<1xf32> to vector<1x1xf32>
    %cst_11 = arith.constant 8.000000e+00 : f32
    %24 = vector.broadcast %cst_11 : f32 to vector<1x1xf32>
    %25 = arith.divf %23, %24 : vector<1x1xf32>
    %26 = vector.broadcast %16 : vector<1x1xf32> to vector<1x8xf32>
    %27 = arith.subf %12, %26 : vector<1x8xf32>
    %cst_12 = arith.constant 9.99999974E-6 : f32
    %28 = vector.broadcast %cst_12 : f32 to vector<1x1xf32>
    %29 = arith.addf %25, %28 : vector<1x1xf32>
    %30 = math.rsqrt %29 : vector<1x1xf32>
    %31 = vector.broadcast %30 : vector<1x1xf32> to vector<1x8xf32>
    %32 = arith.mulf %27, %31 : vector<1x8xf32>
    %c0_13 = arith.constant 0 : index
    %c0_14 = arith.constant 0 : index
    %33 = vector.load %arg4[%c0_13, %c0_14] : memref<1x8xf32, #tpu.memory_space<vmem>>, vector<1x8xf32>
    %34 = arith.mulf %32, %33 : vector<1x8xf32>
    %c0_15 = arith.constant 0 : index
    %c0_16 = arith.constant 0 : index
    %35 = vector.load %arg5[%c0_15, %c0_16] : memref<1x8xf32, #tpu.memory_space<vmem>>, vector<1x8xf32>
    %36 = arith.addf %34, %35 : vector<1x8xf32>
    %cst_17 = arith.constant 0.000000e+00 : f32
    %37 = vector.broadcast %cst_17 : f32 to vector<1x8xf32>
    %38 = arith.maximumf %36, %37 : vector<1x8xf32>
    %c0_18 = arith.constant 0 : index
    %c0_19 = arith.constant 0 : index
    %39 = vector.load %arg6[%c0_18, %c0_19] : memref<4x8xf32, #tpu.memory_space<vmem>>, vector<4x8xf32>
    %40 = vector.broadcast %38 : vector<1x8xf32> to vector<4x8xf32>
    %41 = arith.mulf %39, %40 : vector<4x8xf32>
    %cst_20 = arith.constant dense<0.000000e+00> : vector<4xf32>
    %42 = vector.multi_reduction <add>, %41, %cst_20 [1] : vector<4x8xf32> to vector<4xf32>
    %43 = vector.shape_cast %42 : vector<4xf32> to vector<4x1xf32>
    %c0_21 = arith.constant 0 : index
    %c0_22 = arith.constant 0 : index
    %44 = vector.load %arg7[%c0_21, %c0_22] : memref<4x1xf32, #tpu.memory_space<vmem>>, vector<4x1xf32>
    %45 = arith.addf %43, %44 : vector<4x1xf32>
    %cst_23 = arith.constant 0.000000e+00 : f32
    %46 = vector.broadcast %cst_23 : f32 to vector<4x1xf32>
    %47 = arith.subf %46, %45 : vector<4x1xf32>
    %48 = math.exp %47 : vector<4x1xf32>
    %cst_24 = arith.constant 1.000000e+00 : f32
    %49 = vector.broadcast %cst_24 : f32 to vector<4x1xf32>
    %50 = arith.addf %49, %48 : vector<4x1xf32>
    %cst_25 = arith.constant 1.000000e+00 : f32
    %51 = vector.broadcast %cst_25 : f32 to vector<4x1xf32>
    %52 = arith.divf %51, %50 : vector<4x1xf32>
    %53 = vector.broadcast %52 : vector<4x1xf32> to vector<4x256xf32>
    %54 = arith.mulf %1, %53 : vector<4x256xf32>
    %c0_26 = arith.constant 0 : index
    %c0_27 = arith.constant 0 : index
    %c0_28 = arith.constant 0 : index
    %55 = vector.load %arg8[%c0_26, %c0_27, %c0_28] : memref<1x4x256xf32, #tpu.memory_space<vmem>>, vector<1x4x256xf32>
    %56 = vector.shape_cast %55 : vector<1x4x256xf32> to vector<4x256xf32>
    %57 = vector.shape_cast %54 : vector<4x256xf32> to vector<1x4x256xf32>
    tpu.vector_store %arg8[%c0_26, %c0_27, %c0_28], %57 {strides = array<i32>} : memref<1x4x256xf32, #tpu.memory_space<vmem>>, vector<1x4x256xf32>,
    return
  }
  func.func @transform_0(%arg0: i32) -> (i32, i32, i32) {
    %c0_i32 = arith.constant 0 : i32
    %c0_i32_0 = arith.constant 0 : i32
    %c0_i32_1 = arith.constant 0 : i32
    return %arg0, %c0_i32, %c0_i32_0 : i32, i32, i32
  }
  func.func @transform_1(%arg0: i32) -> (i32, i32) {
    %c0_i32 = arith.constant 0 : i32
    %c0_i32_0 = arith.constant 0 : i32
    %c0_i32_1 = arith.constant 0 : i32
    return %c0_i32, %c0_i32_0 : i32, i32
  }
  func.func @transform_2(%arg0: i32) -> (i32, i32) {
    %c0_i32 = arith.constant 0 : i32
    %c0_i32_0 = arith.constant 0 : i32
    %c0_i32_1 = arith.constant 0 : i32
    return %c0_i32, %c0_i32_0 : i32, i32
  }
  func.func @transform_3(%arg0: i32) -> (i32, i32) {
    %c0_i32 = arith.constant 0 : i32
    %c0_i32_0 = arith.constant 0 : i32
    %c0_i32_1 = arith.constant 0 : i32
    return %c0_i32, %c0_i32_0 : i32, i32
  }
  func.func @transform_4(%arg0: i32) -> (i32, i32) {
    %c0_i32 = arith.constant 0 : i32
    %c0_i32_0 = arith.constant 0 : i32
    %c0_i32_1 = arith.constant 0 : i32
    return %c0_i32, %c0_i32_0 : i32, i32
  }
  func.func @transform_5(%arg0: i32) -> (i32, i32) {
    %c0_i32 = arith.constant 0 : i32
    %c0_i32_0 = arith.constant 0 : i32
    %c0_i32_1 = arith.constant 0 : i32
    return %c0_i32, %c0_i32_0 : i32, i32
  }
  func.func @transform_6(%arg0: i32) -> (i32, i32) {
    %c0_i32 = arith.constant 0 : i32
    %c0_i32_0 = arith.constant 0 : i32
    %c0_i32_1 = arith.constant 0 : i32
    return %c0_i32, %c0_i32_0 : i32, i32
  }
  func.func @transform_7(%arg0: i32) -> (i32, i32, i32) {
    %c0_i32 = arith.constant 0 : i32
    %c0_i32_0 = arith.constant 0 : i32
    %c0_i32_1 = arith.constant 0 : i32
    return %arg0, %c0_i32, %c0_i32_0 : i32, i32, i32
  }
}

</mosaic_0001>

<llo_original>
// kernel: tpu_custom_call.1
$region0: #{tpu_custom_call.1}
  #allocation0 [shape = 'u32[]', space=smem, size = 0x4, offset = 0x4, fixed_abs, tag = 'smem constant byte address 0x4 - core index']
  #allocation1 [shape = 'u32[144,128]{1,0:T(1,128)}', space=vmem, size = 0x12000, scoped, tag = 'internal scratch']
  %s0 = inlined_call_operand.hbm [shape: f32[2,4,256], index: 0, kind: input, shape index: {}]
  %s1 = inlined_call_operand.vmem [shape: f32[4,8], index: 1, kind: input, shape index: {}]
  %s2 = inlined_call_operand.vmem [shape: f32[1,8], index: 2, kind: input, shape index: {}]
  %s3 = inlined_call_operand.vmem [shape: f32[1,8], index: 3, kind: input, shape index: {}]
  %s4 = inlined_call_operand.vmem [shape: f32[1,8], index: 4, kind: input, shape index: {}]
  %s5 = inlined_call_operand.vmem [shape: f32[4,8], index: 5, kind: input, shape index: {}]
  %s6 = inlined_call_operand.vmem [shape: f32[4,1], index: 6, kind: input, shape index: {}]
  %s7 = inlined_call_operand.hbm [shape: f32[2,4,256], index: 7, kind: output, shape index: {}]
  %s8 = sld [smem:[#allocation0]]
  $region65: #{tpu_custom_call.1} parent=0
    _
  %s10 = ssub.s32 1, %s8
  %s11 = scalar_select 0, %s10, %s8
  $region1: #{tpu_custom_call.1} parent=0
    #allocation2 [shape = 'u8[8192]{0}', space=vmem, size = 0x2000, scoped, tag = 'input window, operand 0']
    #allocation3 [shape = 's32[2]{0}', space=sflag, size = 0x8, scoped, tag = 'scoped memory for tpu_custom_call.1']
    #allocation4 [shape = 's32[2]{0}', space=sflag, size = 0x8, scoped, tag = 'scoped memory for tpu_custom_call.1']
    #allocation5 [shape = 'u8[8192]{0}', space=vmem, size = 0x2000, scoped, tag = 'output window, operand 0']
    %12 = vsyncpa [#allocation3], 0
    %s13 = scalar_lea.sflag [#allocation3], 1
    %14 = vsyncpa %s13, 0
    %15 = vsyncpa [#allocation4], 0
    %s16 = scalar_lea.sflag [#allocation4], 1
    %17 = vsyncpa %s16, 0
    loop: start=0, step=1, limit=4
    $region2: #{tpu_custom_call.1} parent=1 // loop_pre_header
      _
    $region3: #{tpu_custom_call.1} parent=1 // loop_header
      %s19 = sphi 0, %s23
      %p20 = scmp.ge.s32.totalorder %s19, 4
      %s29 = sphi 0, %s31
      %s32 = sphi 0, %s29
      %s33 = sphi 0, %s32
      %s49 = sphi 0, %s33
      %s53 = sphi 0, %s53
      %s55 = sphi 0, %s53
      %s56 = sphi 0, %s55
      %s70 = sphi 0, %s56
      %s74 = sphi 0, %s74
      %s76 = sphi 0, %s74
      %s77 = sphi 0, %s76
      %s91 = sphi 0, %s77
      %s95 = sphi 0, %s95
      %s97 = sphi 0, %s95
      %s98 = sphi 0, %s97
      %s112 = sphi 0, %s98
      %s116 = sphi 0, %s116
      %s118 = sphi 0, %s116
      %s119 = sphi 0, %s118
      %s133 = sphi 0, %s119
      %s137 = sphi 0, %s137
      %s139 = sphi 0, %s137
      %s140 = sphi 0, %s139
      %s154 = sphi 0, %s140
      %s158 = sphi 0, %s158
      %s160 = sphi 0, %s158
      %s161 = sphi 0, %s160
      %s175 = sphi 0, %s161
      %s181 = sphi 0, %s183
      %s184 = sphi 0, %s181
      %s185 = sphi 0, %s184
      %s201 = sphi 0, %s185
    $region4: #{tpu_custom_call.1} parent=1 // loop_header_branch
      %22 = sbr.rel (%p20) target = $region8
    $region5: #{tpu_custom_call.1} parent=1 // loop_body
      %s24 = ssub.s32 %s19, 1
      %s25 = ssub.s32 %s19, 2
      %s26 = sadd.s32 %s19, 1
      %s27 = ssub.s32 %s19, %s26
      %p28 = scmp.eq.s32.totalorder %s27, 0
      %s30 = sadd.s32 %s29, 1
      %s31 = scalar_select %p28, %s29, %s30
      %p34 = pneg %p28
      %p35 = scmp.eq.s32.totalorder %s19, 1
      %p36 = por %p34, %p35
      %p37 = scmp.ne.s32.totalorder %s29, %s32
      %p38 = scmp.eq.s32.totalorder %s19, 0
      %p39 = por %p37, %p38
      %p40 = scmp.ne.s32.totalorder %s29, %s32
      %p41 = scmp.eq.s32.totalorder %s24, 1
      %p42 = por %p40, %p41
      %p43 = scmp.ne.s32.totalorder %s32, %s33
      %p44 = scmp.eq.s32.totalorder %s24, 0
      %p45 = por %p43, %p44
      %p46 = scmp.ne.s32.totalorder %s32, %s33
      %p47 = scmp.eq.s32.totalorder %s25, 1
      %p48 = por %p46, %p47
      %p50 = scmp.ne.s32.totalorder %s33, %s49
      %p51 = scmp.eq.s32.totalorder %s25, 0
      %p52 = por %p50, %p51
      %s54 = sadd.s32 %s53, 1
      %p57 = scmp.eq.s32.totalorder %s19, 1
      %p58 = scmp.ne.s32.totalorder %s53, %s55
      %p59 = scmp.eq.s32.totalorder %s19, 0
      %p60 = por %p58, %p59
      %p61 = scmp.ne.s32.totalorder %s53, %s55
      %p62 = scmp.eq.s32.totalorder %s24, 1
      %p63 = por %p61, %p62
      %p64 = scmp.ne.s32.totalorder %s55, %s56
      %p65 = scmp.eq.s32.totalorder %s24, 0
      %p66 = por %p64, %p65
      %p67 = scmp.ne.s32.totalorder %s55, %s56
      %p68 = scmp.eq.s32.totalorder %s25, 1
      %p69 = por %p67, %p68
      %p71 = scmp.ne.s32.totalorder %s56, %s70
      %p72 = scmp.eq.s32.totalorder %s25, 0
      %p73 = por %p71, %p72
      %s75 = sadd.s32 %s74, 1
      %p78 = scmp.eq.s32.totalorder %s19, 1
      %p79 = scmp.ne.s32.totalorder %s74, %s76
      %p80 = scmp.eq.s32.totalorder %s19, 0
      %p81 = por %p79, %p80
      %p82 = scmp.ne.s32.totalorder %s74, %s76
      %p83 = scmp.eq.s32.totalorder %s24, 1
      %p84 = por %p82, %p83
      %p85 = scmp.ne.s32.totalorder %s76, %s77
      %p86 = scmp.eq.s32.totalorder %s24, 0
      %p87 = por %p85, %p86
      %p88 = scmp.ne.s32.totalorder %s76, %s77
      %p89 = scmp.eq.s32.totalorder %s25, 1
      %p90 = por %p88, %p89
      %p92 = scmp.ne.s32.totalorder %s77, %s91
      %p93 = scmp.eq.s32.totalorder %s25, 0
      %p94 = por %p92, %p93
      %s96 = sadd.s32 %s95, 1
      %p99 = scmp.eq.s32.totalorder %s19, 1
      %p100 = scmp.ne.s32.totalorder %s95, %s97
      %p101 = scmp.eq.s32.totalorder %s19, 0
      %p102 = por %p100, %p101
      %p103 = scmp.ne.s32.totalorder %s95, %s97
      %p104 = scmp.eq.s32.totalorder %s24, 1
      %p105 = por %p103, %p104
      %p106 = scmp.ne.s32.totalorder %s97, %s98
      %p107 = scmp.eq.s32.totalorder %s24, 0
      %p108 = por %p106, %p107
      %p109 = scmp.ne.s32.totalorder %s97, %s98
      %p110 = scmp.eq.s32.totalorder %s25, 1
      %p111 = por %p109, %p110
      %p113 = scmp.ne.s32.totalorder %s98, %s112
      %p114 = scmp.eq.s32.totalorder %s25, 0
      %p115 = por %p113, %p114
      %s117 = sadd.s32 %s116, 1
      %p120 = scmp.eq.s32.totalorder %s19, 1
      %p121 = scmp.ne.s32.totalorder %s116, %s118
      %p122 = scmp.eq.s32.totalorder %s19, 0
      %p123 = por %p121, %p122
      %p124 = scmp.ne.s32.totalorder %s116, %s118
      %p125 = scmp.eq.s32.totalorder %s24, 1
      %p126 = por %p124, %p125
      %p127 = scmp.ne.s32.totalorder %s118, %s119
      %p128 = scmp.eq.s32.totalorder %s24, 0
      %p129 = por %p127, %p128
      %p130 = scmp.ne.s32.totalorder %s118, %s119
      %p131 = scmp.eq.s32.totalorder %s25, 1
      %p132 = por %p130, %p131
      %p134 = scmp.ne.s32.totalorder %s119, %s133
      %p135 = scmp.eq.s32.totalorder %s25, 0
      %p136 = por %p134, %p135
      %s138 = sadd.s32 %s137, 1
      %p141 = scmp.eq.s32.totalorder %s19, 1
      %p142 = scmp.ne.s32.totalorder %s137, %s139
      %p143 = scmp.eq.s32.totalorder %s19, 0
      %p144 = por %p142, %p143
      %p145 = scmp.ne.s32.totalorder %s137, %s139
      %p146 = scmp.eq.s32.totalorder %s24, 1
      %p147 = por %p145, %p146
      %p148 = scmp.ne.s32.totalorder %s139, %s140
      %p149 = scmp.eq.s32.totalorder %s24, 0
      %p150 = por %p148, %p149
      %p151 = scmp.ne.s32.totalorder %s139, %s140
      %p152 = scmp.eq.s32.totalorder %s25, 1
      %p153 = por %p151, %p152
      %p155 = scmp.ne.s32.totalorder %s140, %s154
      %p156 = scmp.eq.s32.totalorder %s25, 0
      %p157 = por %p155, %p156
      %s159 = sadd.s32 %s158, 1
      %p162 = scmp.eq.s32.totalorder %s19, 1
      %p163 = scmp.ne.s32.totalorder %s158, %s160
      %p164 = scmp.eq.s32.totalorder %s19, 0
      %p165 = por %p163, %p164
      %p166 = scmp.ne.s32.totalorder %s158, %s160
      %p167 = scmp.eq.s32.totalorder %s24, 1
      %p168 = por %p166, %p167
      %p169 = scmp.ne.s32.totalorder %s160, %s161
      %p170 = scmp.eq.s32.totalorder %s24, 0
      %p171 = por %p169, %p170
      %p172 = scmp.ne.s32.totalorder %s160, %s161
      %p173 = scmp.eq.s32.totalorder %s25, 1
      %p174 = por %p172, %p173
      %p176 = scmp.ne.s32.totalorder %s161, %s175
      %p177 = scmp.eq.s32.totalorder %s25, 0
      %p178 = por %p176, %p177
      %s179 = ssub.s32 %s19, %s26
      %p180 = scmp.eq.s32.totalorder %s179, 0
      %s182 = sadd.s32 %s181, 1
      %s183 = scalar_select %p180, %s181, %s182
      %p186 = pneg %p180
      %p187 = scmp.eq.s32.totalorder %s19, 1
      %p188 = por %p186, %p187
      %p189 = scmp.ne.s32.totalorder %s181, %s184
      %p190 = scmp.eq.s32.totalorder %s19, 0
      %p191 = por %p189, %p190
      %p192 = scmp.ne.s32.totalorder %s181, %s184
      %p193 = scmp.eq.s32.totalorder %s24, 1
      %p194 = por %p192, %p193
      %p195 = scmp.ne.s32.totalorder %s184, %s185
      %p196 = scmp.eq.s32.totalorder %s24, 0
      %p197 = por %p195, %p196
      %p198 = scmp.ne.s32.totalorder %s184, %s185
      %p199 = scmp.eq.s32.totalorder %s25, 1
      %p200 = por %p198, %p199
      %p202 = scmp.ne.s32.totalorder %s185, %s201
      %p203 = scmp.eq.s32.totalorder %s25, 0
      %p204 = por %p202, %p203
      %p205 = scmp.le.s32.totalorder 1, %s19
      %p206 = scmp.lt.s32.totalorder %s19, 3
      %p207 = pnand %p205, %p206
      %p208 = pneg %p207
      // Predicated region
      $region9: #{tpu_custom_call.1} parent=5 // pred_check
        _
      $region10: #{tpu_custom_call.1} parent=5 // pred_check_branch
        %210 = sbr.rel (%p207) target = $region12
      $region11: #{tpu_custom_call.1} parent=5 // pred_region
        %s211 = ssub.s32 %s19, 1
        // Predicated region
        $region13: #{tpu_custom_call.1} parent=11 // pred_check
          %p212 = pneg %p66
        $region14: #{tpu_custom_call.1} parent=11 // pred_check_branch
          %214 = sbr.rel (%p212) target = $region16
        $region15: #{tpu_custom_call.1} parent=11 // pred_region
          _
        $region16: #{tpu_custom_call.1} parent=11 // pred_fallthru
          _
        // Predicated region
        $region17: #{tpu_custom_call.1} parent=11 // pred_check
          %p215 = pneg %p87
        $region18: #{tpu_custom_call.1} parent=11 // pred_check_branch
          %217 = sbr.rel (%p215) target = $region20
        $region19: #{tpu_custom_call.1} parent=11 // pred_region
          _
        $region20: #{tpu_custom_call.1} parent=11 // pred_fallthru
          _
        // Predicated region
        $region21: #{tpu_custom_call.1} parent=11 // pred_check
          %p218 = pneg %p108
        $region22: #{tpu_custom_call.1} parent=11 // pred_check_branch
          %220 = sbr.rel (%p218) target = $region24
        $region23: #{tpu_custom_call.1} parent=11 // pred_region
          _
        $region24: #{tpu_custom_call.1} parent=11 // pred_fallthru
          _
        // Predicated region
        $region25: #{tpu_custom_call.1} parent=11 // pred_check
          %p221 = pneg %p129
        $region26: #{tpu_custom_call.1} parent=11 // pred_check_branch
          %223 = sbr.rel (%p221) target = $region28
        $region27: #{tpu_custom_call.1} parent=11 // pred_region
          _
        $region28: #{tpu_custom_call.1} parent=11 // pred_fallthru
          _
        // Predicated region
        $region29: #{tpu_custom_call.1} parent=11 // pred_check
          %p224 = pneg %p150
        $region30: #{tpu_custom_call.1} parent=11 // pred_check_branch
          %226 = sbr.rel (%p224) target = $region32
        $region31: #{tpu_custom_call.1} parent=11 // pred_region
          _
        $region32: #{tpu_custom_call.1} parent=11 // pred_fallthru
          _
        // Predicated region
        $region33: #{tpu_custom_call.1} parent=11 // pred_check
          %p227 = pneg %p171
        $region34: #{tpu_custom_call.1} parent=11 // pred_check_branch
          %229 = sbr.rel (%p227) target = $region36
        $region35: #{tpu_custom_call.1} parent=11 // pred_region
          _
        $region36: #{tpu_custom_call.1} parent=11 // pred_fallthru
          _
      $region12: #{tpu_custom_call.1} parent=5 // pred_fallthru
        _
      %p230 = scmp.lt.s32.totalorder %s19, 2
      // Predicated region
      $region37: #{tpu_custom_call.1} parent=5 // pred_check
        %p231 = pneg %p230
      $region38: #{tpu_custom_call.1} parent=5 // pred_check_branch
        %233 = sbr.rel (%p231) target = $region40
      $region39: #{tpu_custom_call.1} parent=5 // pred_region
        // Predicated region
        $region41: #{tpu_custom_call.1} parent=39 // pred_check
          %p234 = pneg %p39
        $region42: #{tpu_custom_call.1} parent=39 // pred_check_branch
          %236 = sbr.rel (%p234) target = $region44
        $region43: #{tpu_custom_call.1} parent=39 // pred_region
          %s237 = sand.u32 %s29, 1
          %s238 = scalar_lea.sflag [#allocation3], %s237
          %s239 = sand.u32 %s29, 1
          %s240 = smul.addr %s239, 8
          %s241 = scalar_lea.vmem [#allocation2], %s240
          %s243 = ssub.s32 128, 128
          %244 = vsyncadd %s238, %s243
          %s245 = smul.addr %s19, 2
          %s246 = smul.addr %s245, 64
          %s247 = scalar_lea.hbm %s0, %s246
          %s249 = sshll.u32 %s241, 4
          %s250 = int_to_ptr.vmem [resolvable:$true] %s249
          %252 = dma.hbm_to_vmem [thread:$0]  %s247, 128, %s250, %s238
        $region44: #{tpu_custom_call.1} parent=39 // pred_fallthru
          _
      $region40: #{tpu_custom_call.1} parent=5 // pred_fallthru
        _
      %p253 = scmp.le.s32.totalorder 1, %s19
      %p254 = scmp.lt.s32.totalorder %s19, 3
      %p255 = pnand %p253, %p254
      %p256 = pneg %p255
      // Predicated region
      $region45: #{tpu_custom_call.1} parent=5 // pred_check
        _
      $region46: #{tpu_custom_call.1} parent=5 // pred_check_branch
        %258 = sbr.rel (%p255) target = $region48
      $region47: #{tpu_custom_call.1} parent=5 // pred_region
        %s259 = ssub.s32 %s19, 1
        %s260 = sand.u32 %s32, 1
        %s261 = scalar_lea.sflag [#allocation3], %s260
        %s262 = sand.u32 %s32, 1
        %s263 = smul.addr %s262, 8
        %s264 = scalar_lea.vmem [#allocation2], %s263
        // Predicated region
        $region49: #{tpu_custom_call.1} parent=47 // pred_check
          %p265 = pneg %p45
        $region50: #{tpu_custom_call.1} parent=47 // pred_check_branch
          %267 = sbr.rel (%p265) target = $region52
        $region51: #{tpu_custom_call.1} parent=47 // pred_region
          %268 = dma.done %s261, 128
        $region52: #{tpu_custom_call.1} parent=47 // pred_fallthru
          _
        %s269 = sand.u32 %s32, 1
        %s270 = scalar_lea.sflag [#allocation3], %s269
        %s271 = sand.u32 %s32, 1
        %s272 = smul.addr %s271, 8
        %s273 = scalar_lea.vmem [#allocation2], %s272
        %p274 = pneg %p45
        %p275 = pneg %p42
        %p276 = pneg %p66
        %p277 = pneg %p63
        %p278 = pneg %p87
        %p279 = pneg %p84
        %p280 = pneg %p108
        %p281 = pneg %p105
        %p282 = pneg %p129
        %p283 = pneg %p126
        %p284 = pneg %p150
        %p285 = pneg %p147
        %p286 = pneg %p171
        %p287 = pneg %p168
        %p288 = pneg %p197
        %p289 = pneg %p194
        %s290 = sand.u32 %s184, 1
        %s291 = scalar_lea.sflag [#allocation4], %s290
        %s292 = sand.u32 %s184, 1
        %s293 = smul.addr %s292, 8
        %s294 = scalar_lea.vmem [#allocation5], %s293
        %v295 = vld [vmem:[%s264] sm:$0xff]
        %v297 = vcombine.high %v295, %v295
        %vm299 = vcmask 1043456
        %v300 = vsel %vm299, %v295, 0.0
        %v301 = vsel %vm299, %v297, 0.0
        %v302 = vadd.f32 %v300, %v301
        %303 = vadd.xlane.f32.xlu0 %v302
        %v304 = vpop.xlane.xlu0 %303
        %v305 = vmul.f32 %v304, 0.00390625
        %v306 = vld [vmem:[%s1] sm:$0xf]
        %v307 = vmul.f32 %v306, %v305
        %vm308 = vcmask 60416
        %v309 = vsel %vm308, %v307, 0.0
        %v310 = vrot.slane %v309, 4
        %v311 = vadd.f32 %v309, %v310
        %v312 = vrot.slane %v311, 2
        %v313 = vadd.f32 %v311, %v312
        %v314 = vrot.slane %v313, 1
        %v315 = vadd.f32 %v313, %v314
        %v316 = vld [vmem:[%s2] sm:$0x1]
        %v317 = vadd.f32 %v315, %v316
        %vm318 = vcmask 57344
        %v319 = vsel %vm318, %v317, 0.0
        %320 = vadd.xlane.f32.xlu0 %v319
        %v321 = vpop.xlane.xlu0 %320
        %v322 = vrcp.pop 8.0
        %v323 = vmul.f32 %v321, %v322
        %v324 = vsub.f32 %v317, %v323
        %v325 = vmul.f32 %v324, %v324
        %v326 = vsel %vm318, %v325, 0.0
        %327 = vadd.xlane.f32.xlu0 %v326
        %v328 = vpop.xlane.xlu0 %327
        %v329 = vmul.f32 %v328, %v322
        %v330 = vadd.f32 %v329, 1e-05
        %v331 = vrsqrt.pop %v330
        %v332 = vmul.f32 %v324, %v331
        %v333 = vld [vmem:[%s3] sm:$0x1]
        %v334 = vmul.f32 %v332, %v333
        %v335 = vld [vmem:[%s4] sm:$0x1]
        %v336 = vadd.f32 %v334, %v335
        %v337 = vmax.f32 %v336, 0.0
        %v338 = vld [vmem:[%s5] sm:$0xf]
        %v339 = vlaneseq
        %v340 = vshrl.u32 %v339, 7
        %v341 = vsub.s32 0, %v340
        %v342 = vrot.slane %v337, %v341
        %v343 = vmul.f32 %v338, %v342
        %v344 = vsel %vm308, %v343, 0.0
        %345 = vadd.xlane.f32.xlu0 %v344
        %v346 = vpop.xlane.xlu0 %345
        %v347 = vld [vmem:[%s6] sm:$0xf]
        %v348 = vadd.f32 %v346, %v347
        %v349 = vsub.f32 0.0, %v348
        %v350 = vmul.f32 %v349, 1.442695
        %v351 = vpow.pop %v350
        %v352 = vadd.f32 %v351, 1.0
        %v353 = vrcp.pop %v352
        %v354 = vmul.f32 1.0, %v353
        %356 = vset.pattern.permute.xlu0 0
        %357 = vperm.xlu0 %356, %v354
        %v358 = vpop.permute.xlu0 %357
        %v360 = vunpack.c.l.s4 839922192
        %v361 = vunpack.c.0.s8 %v360
        %v362 = vlaneseq
        %v363 = vshrl.u32 %v362, 7
        %v364 = vsub.s32 %v361, %v363
        %v365 = vrot.slane %v358, %v364
        %v367 = vmul.f32 %v295, %v365
        %368 = vst [vmem:[%s294] sm:$0xff] %v367
        %s369 = sand.u32 %s184, 1
        %s370 = scalar_lea.sflag [#allocation4], %s369
        %s371 = sand.u32 %s184, 1
        %s372 = smul.addr %s371, 8
        %s373 = scalar_lea.vmem [#allocation5], %s372
        // Predicated region
        $region53: #{tpu_custom_call.1} parent=47 // pred_check
          %p374 = pneg %p194
        $region54: #{tpu_custom_call.1} parent=47 // pred_check_branch
          %376 = sbr.rel (%p374) target = $region56
        $region55: #{tpu_custom_call.1} parent=47 // pred_region
          %s378 = ssub.s32 128, 128
          %379 = vsyncadd %s370, %s378
          %s380 = smul.addr %s24, 2
          %s381 = smul.addr %s380, 64
          %s382 = scalar_lea.hbm %s7, %s381
          %s384 = sshll.u32 %s373, 4
          %s385 = int_to_ptr.vmem [resolvable:$true] %s384
          %387 = dma.vmem_to_hbm [thread:$0]  %s385, 128, %s382, %s370
        $region56: #{tpu_custom_call.1} parent=47 // pred_fallthru
          _
      $region48: #{tpu_custom_call.1} parent=5 // pred_fallthru
        _
      %p388 = scmp.le.s32.totalorder 2, %s19
      // Predicated region
      $region57: #{tpu_custom_call.1} parent=5 // pred_check
        %p389 = pneg %p388
      $region58: #{tpu_custom_call.1} parent=5 // pred_check_branch
        %391 = sbr.rel (%p389) target = $region60
      $region59: #{tpu_custom_call.1} parent=5 // pred_region
        %s392 = ssub.s32 %s19, 2
        // Predicated region
        $region61: #{tpu_custom_call.1} parent=59 // pred_check
          %p393 = pneg %p200
        $region62: #{tpu_custom_call.1} parent=59 // pred_check_branch
          %395 = sbr.rel (%p393) target = $region64
        $region63: #{tpu_custom_call.1} parent=59 // pred_region
          %s396 = sand.u32 %s185, 1
          %s397 = scalar_lea.sflag [#allocation4], %s396
          %s398 = sand.u32 %s185, 1
          %s399 = smul.addr %s398, 8
          %s400 = scalar_lea.vmem [#allocation5], %s399
          %401 = dma.done %s397, 128
        $region64: #{tpu_custom_call.1} parent=59 // pred_fallthru
          _
      $region60: #{tpu_custom_call.1} parent=5 // pred_fallthru
        _
    $region6: #{tpu_custom_call.1} parent=1 // loop_footer
      %s23 = sadd.s32 1, %s19
    $region7: #{tpu_custom_call.1} parent=1 // loop_footer_branch
      %18 = sbr.rel target = $region3
    $region8: #{tpu_custom_call.1} parent=1 // loop_exit
      _
    %402 = vsyncpa [#allocation3], 1
    %s403 = scalar_lea.sflag [#allocation3], 1
    %404 = vsyncpa %s403, 1
    %405 = vsyncpa [#allocation4], 1
    %s406 = scalar_lea.sflag [#allocation4], 1
    %407 = vsyncpa %s406, 1

</llo_original>
